<compile_context>
chip_gen: v5e
topology: v5e:2x2
jax: 0.10.0
libtpu: 0.0.40
codegen_flags: <defaults>
</compile_context>

<pallas_src>
import functools
import math

import jax
import jax.numpy as jnp
from jax.experimental import pallas as pl
from jax.experimental.pallas import tpu as pltpu

GAMMA = -0.1
ZETA = 1.1
BETA = 2.0 / 3.0

LANE = 128


def _round_up(n, m):
    return ((n + m - 1) // m) * m


# ---------------- fused Pallas kernel ----------------

def fused_icnn_kernel(*refs, n_layers):
    """refs = [x_ref, w0, b0, (wh_l, wx_l, b_l) for l in 1..n_layers-1, out_ref].

    w0   : (D_pad, N0_pad)  bf16  -- folded layer-0 weight (both branches share x0)
    wh_l : (Kh_pad, N_pad)  bf16  -- relu-clamped hidden-branch weight, transposed
    wx_l : (D_pad, N_pad)   bf16  -- relu-clamped x0-branch weight, transposed
    b_l  : (1, N_pad)       f32
    The whole per-batch-tile forward runs here; h stays on-chip between layers.
    """
    x_ref = refs[0]
    out_ref = refs[-1]
    wb = refs[1:-1]

    x0b = x_ref[...].astype(jnp.bfloat16)              # (TB, D_pad) bf16 for the MXU

    # ---- layer 0 (folded: one matmul instead of two) ----
    w0 = wb[0][...]                                    # (D_pad, N0_pad) bf16
    b0 = wb[1][...]                                    # (1, N0_pad) f32
    y = jnp.dot(x0b, w0, preferred_element_type=jnp.float32) + b0
    h = jnp.maximum(y, 0.0).astype(jnp.bfloat16)

    # ---- layers 1 .. n_layers-1 (two dots, f32 accumulation, no concat copies) ----
    idx = 2
    for l in range(1, n_layers):
        wh = wb[idx][...]                              # (Kh_pad, N_pad) bf16
        wx = wb[idx + 1][...]                          # (D_pad, N_pad) bf16
        b = wb[idx + 2][...]                           # (1, N_pad) f32
        idx += 3
        y = (jnp.dot(h, wh, preferred_element_type=jnp.float32)
             + jnp.dot(x0b, wx, preferred_element_type=jnp.float32)
             + b)
        if l < n_layers - 1:
            h = jnp.maximum(y, 0.0).astype(jnp.bfloat16)
        else:
            out_ref[...] = y                           # lane-dense (TB, Nout_pad) f32 store


# ---------------- one-time parameter preparation (params-only, off the hot path) -------

def _gate(log_alpha):
    return jnp.clip(jax.nn.sigmoid(log_alpha) * (ZETA - GAMMA) + GAMMA, 0.0, 1.0)


def _pad2(a, rows, cols):
    return jnp.pad(a, ((0, rows - a.shape[0]), (0, cols - a.shape[1])))


def prepare_icnn_params(params):
    """Fold L0 gates / relu clamps / layer-0 weight+bias sums, pad every feature dim to
    128 lanes, transpose to (K, N), cast matmul operands to bf16.  Call once; result is
    reused by every forward call."""
    layers = params["layers"]
    in_layers = params["input_layers"]
    out_x0 = params["output_layer_x0"]

    input_dim = layers[0]["weight"].shape[1]
    hidden = [l["weight"].shape[0] for l in layers[:-1]]
    output_dim = layers[-1]["weight"].shape[0]
    d_pad = _round_up(input_dim, LANE)

    mats, biases = [], []

    # layer 0: both branches consume x0 -> fold gated weights (in f32) into ONE matrix.
    L0, I0 = layers[0], in_layers[0]
    n0_pad = _round_up(hidden[0], LANE)
    w0 = L0["weight"] * _gate(L0["log_alpha"]) + I0["weight"] * _gate(I0["log_alpha"])
    mats.append([_pad2(w0, n0_pad, d_pad).T.astype(jnp.bfloat16)])
    biases.append(jnp.pad((L0["bias"] + I0["bias"]).astype(jnp.float32),
                          (0, n0_pad - hidden[0]))[None, :])

    # middle layers: relu-clamped raw weights (h-branch + x0-branch), single bias.
    for i in range(1, len(hidden)):
        Li, Ii = layers[i], in_layers[i]
        kh_pad = _round_up(hidden[i - 1], LANE)
        n_pad = _round_up(hidden[i], LANE)
        mats.append([
            _pad2(jax.nn.relu(Li["weight"]), n_pad, kh_pad).T.astype(jnp.bfloat16),
            _pad2(jax.nn.relu(Ii["weight"]), n_pad, d_pad).T.astype(jnp.bfloat16),
        ])
        biases.append(jnp.pad(Li["bias"].astype(jnp.float32),
                              (0, n_pad - hidden[i]))[None, :])

    # output layer: relu-clamped weights, no output activation.
    Lout = layers[-1]
    kh_pad = _round_up(hidden[-1], LANE)
    nout_pad = _round_up(output_dim, LANE)
    mats.append([
        _pad2(jax.nn.relu(Lout["weight"]), nout_pad, kh_pad).T.astype(jnp.bfloat16),
        _pad2(jax.nn.relu(out_x0["weight"]), nout_pad, d_pad).T.astype(jnp.bfloat16),
    ])
    biases.append(jnp.pad(Lout["bias"].astype(jnp.float32),
                          (0, nout_pad - output_dim))[None, :])

    return dict(mats=mats, bias=biases,
                input_dim=int(input_dim), output_dim=int(output_dim),
                d_pad=int(d_pad), nout_pad=int(nout_pad))


# ---------------- fused forward pass ----------------

def icnn_forward_pallas(prepared, x, *, batch_tile=256):
    mats, biases = prepared["mats"], prepared["bias"]
    input_dim, output_dim = prepared["input_dim"], prepared["output_dim"]
    d_pad, nout_pad = prepared["d_pad"], prepared["nout_pad"]
    n_layers = len(mats)

    B = x.shape[0]
    tb = min(batch_tile, _round_up(B, 16))   # >=16 rows: clean bf16 sublane packing
    b_pad = _round_up(B, tb)

    x_pad = jnp.pad(x.astype(jnp.float32),
                    ((0, b_pad - B), (0, d_pad - input_dim)))

    grid = (b_pad // tb,)

    in_specs = [pl.BlockSpec((tb, d_pad), lambda i: (i, 0))]
    args = [x_pad]
    for ws, b in zip(mats, biases):
        for w in ws:
            # constant index_map -> weights stay VMEM-resident across batch tiles
            in_specs.append(pl.BlockSpec(w.shape, lambda i: (0, 0)))
            args.append(w)
        in_specs.append(pl.BlockSpec(b.shape, lambda i: (0, 0)))
        args.append(b)

    out_specs = pl.BlockSpec((tb, nout_pad), lambda i: (i, 0))
    out_shape = jax.ShapeDtypeStruct((b_pad, nout_pad), jnp.float32)

    # VMEM budget: double-buffered x/out tiles + resident params + activation headroom.
    param_bytes = sum(sum(w.size * 2 for w in ws) + b.size * 4
                      for ws, b in zip(mats, biases))
    block_bytes = tb * d_pad * 4 + tb * nout_pad * 4
    vmem_limit = int(min(max(4 * block_bytes + param_bytes + (4 << 20), 16 << 20),
                         48 << 20))

    flops = sum(2 * b_pad * w.shape[0] * w.shape[1] for ws in mats for w in ws)
    bytes_accessed = x_pad.size * 4 + b_pad * nout_pad * 4 + param_bytes
    cost = pl.CostEstimate(flops=flops, transcendentals=0,
                           bytes_accessed=bytes_accessed)

    kernel = functools.partial(fused_icnn_kernel, n_layers=n_layers)
    out = pl.pallas_call(
        kernel,
        out_shape=out_shape,
        grid=grid,
        in_specs=in_specs,
        out_specs=out_specs,
        compiler_params=pltpu.CompilerParams(
            dimension_semantics=("parallel",),   # shards batch tiles across v7x's 2 TCs
            vmem_limit_bytes=vmem_limit),
        cost_estimate=cost,
    )(*args)

    return out[:B, :output_dim]


# ---------------- deterministic parameter init (mirrors L0Linear.reset_parameters) -----

def init_l0_linear(key, in_f, out_f):
    kw, kb, ka = jax.random.split(key, 3)
    bound = 1.0 / math.sqrt(in_f)
    weight = jax.random.uniform(kw, (out_f, in_f), jnp.float32, -bound, bound)
    bias = jax.random.uniform(kb, (out_f,), jnp.float32, -bound, bound)
    log_alpha = jax.random.normal(ka, (out_f, in_f), jnp.float32) * 0.01
    return dict(weight=weight, bias=bias, log_alpha=log_alpha)


def init_icnn(key, input_dim, hidden_dims, output_dim):
    nh = len(hidden_dims)
    keys = jax.random.split(key, (nh + 1) + nh + 1)
    dims = [input_dim] + list(hidden_dims)
    layers = [init_l0_linear(keys[i], dims[i], dims[i + 1]) for i in range(nh)]
    layers.append(init_l0_linear(keys[nh], hidden_dims[-1], output_dim))
    input_layers = [init_l0_linear(keys[nh + 1 + i], input_dim, hidden_dims[i])
                    for i in range(nh)]
    output_layer_x0 = init_l0_linear(keys[-1], input_dim, output_dim)
    return dict(layers=layers, input_layers=input_layers,
                output_layer_x0=output_layer_x0)


# ---------------- pure-JAX f32 reference ----------------

def icnn_forward_ref(params, x):
    def gate(la):
        return jnp.clip(jax.nn.sigmoid(la) * (ZETA - GAMMA) + GAMMA, 0.0, 1.0)

    x0 = x
    L0, I0 = params["layers"][0], params["input_layers"][0]
    h = jax.nn.relu(
        x @ (L0["weight"] * gate(L0["log_alpha"])).T + L0["bias"]
        + x0 @ (I0["weight"] * gate(I0["log_alpha"])).T + I0["bias"]
    )
    for i in range(1, len(params["input_layers"])):
        Li, Ii = params["layers"][i], params["input_layers"][i]
        h = jax.nn.relu(h @ jax.nn.relu(Li["weight"]).T
                        + x0 @ jax.nn.relu(Ii["weight"]).T + Li["bias"])
    Lout, Ix0 = params["layers"][-1], params["output_layer_x0"]
    return (h @ jax.nn.relu(Lout["weight"]).T
            + x0 @ jax.nn.relu(Ix0["weight"]).T + Lout["bias"])


if __name__ == "__main__":
    key = jax.random.PRNGKey(0)
    kp, kx = jax.random.split(key)

    input_dim, hidden_dims, output_dim = 16, [32, 32], 8
    batch = 4

    params = init_icnn(kp, input_dim, hidden_dims, output_dim)
    x = jax.random.normal(kx, (batch, input_dim), jnp.float32)

    prepared = prepare_icnn_params(params)      # one-time, params-only
    out = icnn_forward_pallas(prepared, x)
    out = jax.block_until_ready(out)

    ref = icnn_forward_ref(params, x)
    assert out.shape == (batch, output_dim)
    # bf16 matmul operands / f32 accumulation -> relaxed tolerance vs. the f32 reference.
    assert jnp.allclose(out, ref, atol=5e-2, rtol=5e-2), (out, ref)

    print("KERNEL_OK")
</pallas_src>

<mosaic_0001>
module attributes {stable_mosaic.version = 11 : i64} {
  func.func @fused_icnn_kernel(%arg0: i32, %arg1: memref<16x128xf32, #tpu.memory_space<vmem>>, %arg2: memref<128x128xbf16, #tpu.memory_space<vmem>>, %arg3: memref<1x128xf32, #tpu.memory_space<vmem>>, %arg4: memref<128x128xbf16, #tpu.memory_space<vmem>>, %arg5: memref<128x128xbf16, #tpu.memory_space<vmem>>, %arg6: memref<1x128xf32, #tpu.memory_space<vmem>>, %arg7: memref<128x128xbf16, #tpu.memory_space<vmem>>, %arg8: memref<128x128xbf16, #tpu.memory_space<vmem>>, %arg9: memref<1x128xf32, #tpu.memory_space<vmem>>, %arg10: memref<16x128xf32, #tpu.memory_space<vmem>>) attributes {dimension_semantics = [#tpu.dimension_semantics<parallel>], iteration_bounds = array<i64: 1>, scalar_prefetch = 0 : i64, scratch_operands = 0 : i64, tpu.core_type = #tpu.core_type<tc>, window_params = [{transform_indices = @transform_0, window_bounds = array<i64: 16, 128>}, {pipeline_mode = #tpu.pipeline_mode<synchronous>, transform_indices = @transform_1, window_bounds = array<i64: 128, 128>}, {pipeline_mode = #tpu.pipeline_mode<synchronous>, transform_indices = @transform_2, window_bounds = array<i64: 1, 128>}, {pipeline_mode = #tpu.pipeline_mode<synchronous>, transform_indices = @transform_3, window_bounds = array<i64: 128, 128>}, {pipeline_mode = #tpu.pipeline_mode<synchronous>, transform_indices = @transform_4, window_bounds = array<i64: 128, 128>}, {pipeline_mode = #tpu.pipeline_mode<synchronous>, transform_indices = @transform_5, window_bounds = array<i64: 1, 128>}, {pipeline_mode = #tpu.pipeline_mode<synchronous>, transform_indices = @transform_6, window_bounds = array<i64: 128, 128>}, {pipeline_mode = #tpu.pipeline_mode<synchronous>, transform_indices = @transform_7, window_bounds = array<i64: 128, 128>}, {pipeline_mode = #tpu.pipeline_mode<synchronous>, transform_indices = @transform_8, window_bounds = array<i64: 1, 128>}, {transform_indices = @transform_9, window_bounds = array<i64: 16, 128>}]} {
    %c0 = arith.constant 0 : index
    %c0_0 = arith.constant 0 : index
    %0 = vector.load %arg1[%c0, %c0_0] : memref<16x128xf32, #tpu.memory_space<vmem>>, vector<16x128xf32>
    %1 = arith.truncf %0 : vector<16x128xf32> to vector<16x128xbf16>
    %c0_1 = arith.constant 0 : index
    %c0_2 = arith.constant 0 : index
    %2 = vector.load %arg2[%c0_1, %c0_2] : memref<128x128xbf16, #tpu.memory_space<vmem>>, vector<128x128xbf16>
    %c0_3 = arith.constant 0 : index
    %c0_4 = arith.constant 0 : index
    %3 = vector.load %arg3[%c0_3, %c0_4] : memref<1x128xf32, #tpu.memory_space<vmem>>, vector<1x128xf32>
    %cst = arith.constant dense<0.000000e+00> : vector<16x128xf32>
    %4 = tpu.matmul %1, %2, %cst {dimension_numbers = #tpu.dot_dimension_numbers<[1], [0], [0], [1], [0, 0, 1, 1], [], []>} : vector<16x128xbf16>, vector<128x128xbf16>, vector<16x128xf32> -> vector<16x128xf32>
    %5 = vector.broadcast %3 : vector<1x128xf32> to vector<16x128xf32>
    %6 = arith.addf %4, %5 : vector<16x128xf32>
    %cst_5 = arith.constant 0.000000e+00 : f32
    %7 = vector.broadcast %cst_5 : f32 to vector<16x128xf32>
    %8 = arith.maximumf %6, %7 : vector<16x128xf32>
    %9 = arith.truncf %8 : vector<16x128xf32> to vector<16x128xbf16>
    %c0_6 = arith.constant 0 : index
    %c0_7 = arith.constant 0 : index
    %10 = vector.load %arg4[%c0_6, %c0_7] : memref<128x128xbf16, #tpu.memory_space<vmem>>, vector<128x128xbf16>
    %c0_8 = arith.constant 0 : index
    %c0_9 = arith.constant 0 : index
    %11 = vector.load %arg5[%c0_8, %c0_9] : memref<128x128xbf16, #tpu.memory_space<vmem>>, vector<128x128xbf16>
    %c0_10 = arith.constant 0 : index
    %c0_11 = arith.constant 0 : index
    %12 = vector.load %arg6[%c0_10, %c0_11] : memref<1x128xf32, #tpu.memory_space<vmem>>, vector<1x128xf32>
    %cst_12 = arith.constant dense<0.000000e+00> : vector<16x128xf32>
    %13 = tpu.matmul %9, %10, %cst_12 {dimension_numbers = #tpu.dot_dimension_numbers<[1], [0], [0], [1], [0, 0, 1, 1], [], []>} : vector<16x128xbf16>, vector<128x128xbf16>, vector<16x128xf32> -> vector<16x128xf32>
    %cst_13 = arith.constant dense<0.000000e+00> : vector<16x128xf32>
    %14 = tpu.matmul %1, %11, %cst_13 {dimension_numbers = #tpu.dot_dimension_numbers<[1], [0], [0], [1], [0, 0, 1, 1], [], []>} : vector<16x128xbf16>, vector<128x128xbf16>, vector<16x128xf32> -> vector<16x128xf32>
    %15 = arith.addf %13, %14 : vector<16x128xf32>
    %16 = vector.broadcast %12 : vector<1x128xf32> to vector<16x128xf32>
    %17 = arith.addf %15, %16 : vector<16x128xf32>
    %cst_14 = arith.constant 0.000000e+00 : f32
    %18 = vector.broadcast %cst_14 : f32 to vector<16x128xf32>
    %19 = arith.maximumf %17, %18 : vector<16x128xf32>
    %20 = arith.truncf %19 : vector<16x128xf32> to vector<16x128xbf16>
    %c0_15 = arith.constant 0 : index
    %c0_16 = arith.constant 0 : index
    %21 = vector.load %arg7[%c0_15, %c0_16] : memref<128x128xbf16, #tpu.memory_space<vmem>>, vector<128x128xbf16>
    %c0_17 = arith.constant 0 : index
    %c0_18 = arith.constant 0 : index
    %22 = vector.load %arg8[%c0_17, %c0_18] : memref<128x128xbf16, #tpu.memory_space<vmem>>, vector<128x128xbf16>
    %c0_19 = arith.constant 0 : index
    %c0_20 = arith.constant 0 : index
    %23 = vector.load %arg9[%c0_19, %c0_20] : memref<1x128xf32, #tpu.memory_space<vmem>>, vector<1x128xf32>
    %cst_21 = arith.constant dense<0.000000e+00> : vector<16x128xf32>
    %24 = tpu.matmul %20, %21, %cst_21 {dimension_numbers = #tpu.dot_dimension_numbers<[1], [0], [0], [1], [0, 0, 1, 1], [], []>} : vector<16x128xbf16>, vector<128x128xbf16>, vector<16x128xf32> -> vector<16x128xf32>
    %cst_22 = arith.constant dense<0.000000e+00> : vector<16x128xf32>
    %25 = tpu.matmul %1, %22, %cst_22 {dimension_numbers = #tpu.dot_dimension_numbers<[1], [0], [0], [1], [0, 0, 1, 1], [], []>} : vector<16x128xbf16>, vector<128x128xbf16>, vector<16x128xf32> -> vector<16x128xf32>
    %26 = arith.addf %24, %25 : vector<16x128xf32>
    %27 = vector.broadcast %23 : vector<1x128xf32> to vector<16x128xf32>
    %28 = arith.addf %26, %27 : vector<16x128xf32>
    %c0_23 = arith.constant 0 : index
    %c0_24 = arith.constant 0 : index
    %29 = vector.load %arg10[%c0_23, %c0_24] : memref<16x128xf32, #tpu.memory_space<vmem>>, vector<16x128xf32>
    tpu.vector_store %arg10[%c0_23, %c0_24], %28 {strides = array<i32>} : memref<16x128xf32, #tpu.memory_space<vmem>>, vector<16x128xf32>,
    return
  }
  func.func @transform_0(%arg0: i32) -> (i32, i32) {
    %c0_i32 = arith.constant 0 : i32
    %c0_i32_0 = arith.constant 0 : i32
    return %arg0, %c0_i32 : i32, i32
  }
  func.func @transform_1(%arg0: i32) -> (i32, i32) {
    %c0_i32 = arith.constant 0 : i32
    %c0_i32_0 = arith.constant 0 : i32
    %c0_i32_1 = arith.constant 0 : i32
    return %c0_i32, %c0_i32_0 : i32, i32
  }
  func.func @transform_2(%arg0: i32) -> (i32, i32) {
    %c0_i32 = arith.constant 0 : i32
    %c0_i32_0 = arith.constant 0 : i32
    %c0_i32_1 = arith.constant 0 : i32
    return %c0_i32, %c0_i32_0 : i32, i32
  }
  func.func @transform_3(%arg0: i32) -> (i32, i32) {
    %c0_i32 = arith.constant 0 : i32
    %c0_i32_0 = arith.constant 0 : i32
    %c0_i32_1 = arith.constant 0 : i32
    return %c0_i32, %c0_i32_0 : i32, i32
  }
  func.func @transform_4(%arg0: i32) -> (i32, i32) {
    %c0_i32 = arith.constant 0 : i32
    %c0_i32_0 = arith.constant 0 : i32
    %c0_i32_1 = arith.constant 0 : i32
    return %c0_i32, %c0_i32_0 : i32, i32
  }
  func.func @transform_5(%arg0: i32) -> (i32, i32) {
    %c0_i32 = arith.constant 0 : i32
    %c0_i32_0 = arith.constant 0 : i32
    %c0_i32_1 = arith.constant 0 : i32
    return %c0_i32, %c0_i32_0 : i32, i32
  }
  func.func @transform_6(%arg0: i32) -> (i32, i32) {
    %c0_i32 = arith.constant 0 : i32
    %c0_i32_0 = arith.constant 0 : i32
    %c0_i32_1 = arith.constant 0 : i32
    return %c0_i32, %c0_i32_0 : i32, i32
  }
  func.func @transform_7(%arg0: i32) -> (i32, i32) {
    %c0_i32 = arith.constant 0 : i32
    %c0_i32_0 = arith.constant 0 : i32
    %c0_i32_1 = arith.constant 0 : i32
    return %c0_i32, %c0_i32_0 : i32, i32
  }
  func.func @transform_8(%arg0: i32) -> (i32, i32) {
    %c0_i32 = arith.constant 0 : i32
    %c0_i32_0 = arith.constant 0 : i32
    %c0_i32_1 = arith.constant 0 : i32
    return %c0_i32, %c0_i32_0 : i32, i32
  }
  func.func @transform_9(%arg0: i32) -> (i32, i32) {
    %c0_i32 = arith.constant 0 : i32
    %c0_i32_0 = arith.constant 0 : i32
    return %arg0, %c0_i32 : i32, i32
  }
}

</mosaic_0001>

<llo_original>
// kernel: tpu_custom_call.1
$region0: #{tpu_custom_call.1}
  #allocation0 [shape = 'u32[]', space=smem, size = 0x4, offset = 0x4, fixed_abs, tag = 'smem constant byte address 0x4 - core index']
  #allocation1 [shape = 'u32[72,128]{1,0:T(1,128)}', space=vmem, size = 0x9000, scoped, tag = 'internal scratch']
  %s0 = inlined_call_operand.hbm [shape: f32[16,128], index: 0, kind: input, shape index: {}]
  %s1 = inlined_call_operand.hbm [shape: bf16[128,128], index: 1, kind: input, shape index: {}]
  %s2 = inlined_call_operand.vmem [shape: f32[1,128], index: 2, kind: input, shape index: {}]
  %s3 = inlined_call_operand.hbm [shape: bf16[128,128], index: 3, kind: input, shape index: {}]
  %s4 = inlined_call_operand.hbm [shape: bf16[128,128], index: 4, kind: input, shape index: {}]
  %s5 = inlined_call_operand.vmem [shape: f32[1,128], index: 5, kind: input, shape index: {}]
  %s6 = inlined_call_operand.hbm [shape: bf16[128,128], index: 6, kind: input, shape index: {}]
  %s7 = inlined_call_operand.hbm [shape: bf16[128,128], index: 7, kind: input, shape index: {}]
  %s8 = inlined_call_operand.vmem [shape: f32[1,128], index: 8, kind: input, shape index: {}]
  %s9 = inlined_call_operand.hbm [shape: f32[16,128], index: 9, kind: output, shape index: {}]
  %s10 = sld [smem:[#allocation0]]
  $region70: #{tpu_custom_call.1} parent=0
    _
  %s12 = ssub.s32 1, %s10
  %s13 = scalar_select 0, %s12, %s10
  $region1: #{tpu_custom_call.1} parent=0
    #allocation2 [shape = 'u8[8192]{0}', space=vmem, size = 0x2000, scoped, tag = 'input window, operand 0, single buffered']
    #allocation3 [shape = 's32[1]{0}', space=sflag, size = 0x4, scoped, tag = 'scoped memory for tpu_custom_call.1']
    #allocation4 [shape = 's32[1]{0}', space=sflag, size = 0x4, scoped, tag = 'scoped memory for tpu_custom_call.1']
    #allocation5 [shape = 'u8[32768]{0}', space=vmem, size = 0x8000, scoped, tag = 'input window, operand 1, single buffered']
    #allocation6 [shape = 's32[1]{0}', space=sflag, size = 0x4, scoped, tag = 'scoped memory for tpu_custom_call.1']
    #allocation7 [shape = 'u8[32768]{0}', space=vmem, size = 0x8000, scoped, tag = 'input window, operand 3, single buffered']
    #allocation8 [shape = 'u8[32768]{0}', space=vmem, size = 0x8000, scoped, tag = 'input window, operand 4, single buffered']
    #allocation9 [shape = 's32[1]{0}', space=sflag, size = 0x4, scoped, tag = 'scoped memory for tpu_custom_call.1']
    #allocation10 [shape = 'u8[32768]{0}', space=vmem, size = 0x8000, scoped, tag = 'input window, operand 6, single buffered']
    #allocation11 [shape = 'u8[32768]{0}', space=vmem, size = 0x8000, scoped, tag = 'input window, operand 7, single buffered']
    #allocation12 [shape = 's32[1]{0}', space=sflag, size = 0x4, scoped, tag = 'scoped memory for tpu_custom_call.1']
    #allocation13 [shape = 'u8[8192]{0}', space=vmem, size = 0x2000, scoped, tag = 'output window, operand 0, single buffered']
    %14 = vsyncpa [#allocation3], 0
    %15 = vsyncpa [#allocation6], 0
    %16 = vsyncpa [#allocation9], 0
    %17 = vsyncpa [#allocation12], 0
    %18 = vsyncpa [#allocation4], 0
    // Predicated region
    $region2: #{tpu_custom_call.1} parent=1 // pred_check
      _
    $region3: #{tpu_custom_call.1} parent=1 // pred_check_branch
      %20 = sbr.rel (0) target = $region5
    $region4: #{tpu_custom_call.1} parent=1 // pred_region
      %22 = vsyncadd [#allocation3], 0
      %s23 = sshll.u32 %s0, 4
      %s24 = int_to_ptr.hbm [resolvable:$true] %s23
      %s25 = sshll.u32 [#allocation2], 4
      %s26 = int_to_ptr.vmem [resolvable:$true] %s25
      %31 = dma.hbm_to_vmem [thread:$0]  %s24, 256, %s26, [#allocation3], 128, 128, 8
    $region5: #{tpu_custom_call.1} parent=1 // pred_fallthru
      _
    // Predicated region
    $region6: #{tpu_custom_call.1} parent=1 // pred_check
      _
    $region7: #{tpu_custom_call.1} parent=1 // pred_check_branch
      %33 = sbr.rel (0) target = $region9
    $region8: #{tpu_custom_call.1} parent=1 // pred_region
      %35 = vsyncadd [#allocation6], 0
      %s36 = sshll.u32 %s1, 4
      %s37 = int_to_ptr.hbm [resolvable:$true] %s36
      %s38 = sshll.u32 [#allocation5], 4
      %s39 = int_to_ptr.vmem [resolvable:$true] %s38
      %44 = dma.hbm_to_vmem [thread:$0]  %s37, 1024, %s39, [#allocation6], 64, 64, 4
    $region9: #{tpu_custom_call.1} parent=1 // pred_fallthru
      _
    // Predicated region
    $region10: #{tpu_custom_call.1} parent=1 // pred_check
      _
    $region11: #{tpu_custom_call.1} parent=1 // pred_check_branch
      %46 = sbr.rel (0) target = $region13
    $region12: #{tpu_custom_call.1} parent=1 // pred_region
      _
    $region13: #{tpu_custom_call.1} parent=1 // pred_fallthru
      _
    // Predicated region
    $region14: #{tpu_custom_call.1} parent=1 // pred_check
      _
    $region15: #{tpu_custom_call.1} parent=1 // pred_check_branch
      %48 = sbr.rel (0) target = $region17
    $region16: #{tpu_custom_call.1} parent=1 // pred_region
      %50 = vsyncadd [#allocation6], 0
      %s51 = sshll.u32 %s3, 4
      %s52 = int_to_ptr.hbm [resolvable:$true] %s51
      %s53 = sshll.u32 [#allocation7], 4
      %s54 = int_to_ptr.vmem [resolvable:$true] %s53
      %59 = dma.hbm_to_vmem [thread:$0]  %s52, 1024, %s54, [#allocation6], 64, 64, 4
    $region17: #{tpu_custom_call.1} parent=1 // pred_fallthru
      _
    // Predicated region
    $region18: #{tpu_custom_call.1} parent=1 // pred_check
      _
    $region19: #{tpu_custom_call.1} parent=1 // pred_check_branch
      %61 = sbr.rel (0) target = $region21
    $region20: #{tpu_custom_call.1} parent=1 // pred_region
      %63 = vsyncadd [#allocation9], 0
      %s64 = sshll.u32 %s4, 4
      %s65 = int_to_ptr.hbm [resolvable:$true] %s64
      %s66 = sshll.u32 [#allocation8], 4
      %s67 = int_to_ptr.vmem [resolvable:$true] %s66
      %72 = dma.hbm_to_vmem [thread:$0]  %s65, 1024, %s67, [#allocation9], 64, 64, 4
    $region21: #{tpu_custom_call.1} parent=1 // pred_fallthru
      _
    // Predicated region
    $region22: #{tpu_custom_call.1} parent=1 // pred_check
      _
    $region23: #{tpu_custom_call.1} parent=1 // pred_check_branch
      %74 = sbr.rel (0) target = $region25
    $region24: #{tpu_custom_call.1} parent=1 // pred_region
      _
    $region25: #{tpu_custom_call.1} parent=1 // pred_fallthru
      _
    // Predicated region
    $region26: #{tpu_custom_call.1} parent=1 // pred_check
      _
    $region27: #{tpu_custom_call.1} parent=1 // pred_check_branch
      %76 = sbr.rel (0) target = $region29
    $region28: #{tpu_custom_call.1} parent=1 // pred_region
      %78 = vsyncadd [#allocation9], 0
      %s79 = sshll.u32 %s6, 4
      %s80 = int_to_ptr.hbm [resolvable:$true] %s79
      %s81 = sshll.u32 [#allocation10], 4
      %s82 = int_to_ptr.vmem [resolvable:$true] %s81
      %87 = dma.hbm_to_vmem [thread:$0]  %s80, 1024, %s82, [#allocation9], 64, 64, 4
    $region29: #{tpu_custom_call.1} parent=1 // pred_fallthru
      _
    // Predicated region
    $region30: #{tpu_custom_call.1} parent=1 // pred_check
      _
    $region31: #{tpu_custom_call.1} parent=1 // pred_check_branch
      %89 = sbr.rel (0) target = $region33
    $region32: #{tpu_custom_call.1} parent=1 // pred_region
      %91 = vsyncadd [#allocation12], 0
      %s92 = sshll.u32 %s7, 4
      %s93 = int_to_ptr.hbm [resolvable:$true] %s92
      %s94 = sshll.u32 [#allocation11], 4
      %s95 = int_to_ptr.vmem [resolvable:$true] %s94
      %100 = dma.hbm_to_vmem [thread:$0]  %s93, 1024, %s95, [#allocation12], 64, 64, 4
    $region33: #{tpu_custom_call.1} parent=1 // pred_fallthru
      _
    // Predicated region
    $region34: #{tpu_custom_call.1} parent=1 // pred_check
      _
    $region35: #{tpu_custom_call.1} parent=1 // pred_check_branch
      %102 = sbr.rel (0) target = $region37
    $region36: #{tpu_custom_call.1} parent=1 // pred_region
      _
    $region37: #{tpu_custom_call.1} parent=1 // pred_fallthru
      _
    // Predicated region
    $region38: #{tpu_custom_call.1} parent=1 // pred_check
      _
    $region39: #{tpu_custom_call.1} parent=1 // pred_check_branch
      %104 = sbr.rel (0) target = $region41
    $region40: #{tpu_custom_call.1} parent=1 // pred_region
      %106 = dma.done [#allocation3], 256
    $region41: #{tpu_custom_call.1} parent=1 // pred_fallthru
      _
    // Predicated region
    $region42: #{tpu_custom_call.1} parent=1 // pred_check
      _
    $region43: #{tpu_custom_call.1} parent=1 // pred_check_branch
      %108 = sbr.rel (0) target = $region45
    $region44: #{tpu_custom_call.1} parent=1 // pred_region
      %110 = dma.done [#allocation6], 1024
    $region45: #{tpu_custom_call.1} parent=1 // pred_fallthru
      _
    // Predicated region
    $region46: #{tpu_custom_call.1} parent=1 // pred_check
      _
    $region47: #{tpu_custom_call.1} parent=1 // pred_check_branch
      %112 = sbr.rel (0) target = $region49
    $region48: #{tpu_custom_call.1} parent=1 // pred_region
      %114 = dma.done [#allocation6], 1024
    $region49: #{tpu_custom_call.1} parent=1 // pred_fallthru
      _
    // Predicated region
    $region50: #{tpu_custom_call.1} parent=1 // pred_check
      _
    $region51: #{tpu_custom_call.1} parent=1 // pred_check_branch
      %116 = sbr.rel (0) target = $region53
    $region52: #{tpu_custom_call.1} parent=1 // pred_region
      %118 = dma.done [#allocation9], 1024
    $region53: #{tpu_custom_call.1} parent=1 // pred_fallthru
      _
    // Predicated region
    $region54: #{tpu_custom_call.1} parent=1 // pred_check
      _
    $region55: #{tpu_custom_call.1} parent=1 // pred_check_branch
      %120 = sbr.rel (0) target = $region57
    $region56: #{tpu_custom_call.1} parent=1 // pred_region
      %122 = dma.done [#allocation9], 1024
    $region57: #{tpu_custom_call.1} parent=1 // pred_fallthru
      _
    // Predicated region
    $region58: #{tpu_custom_call.1} parent=1 // pred_check
      _
    $region59: #{tpu_custom_call.1} parent=1 // pred_check_branch
      %124 = sbr.rel (0) target = $region61
    $region60: #{tpu_custom_call.1} parent=1 // pred_region
      %126 = dma.done [#allocation12], 1024
    $region61: #{tpu_custom_call.1} parent=1 // pred_fallthru
      _
    %v127 = vld [vmem:[#allocation2] sm:$0xff]
    %v128 = vld [vmem:[#allocation2 + $0x8] sm:$0xff]
    %v129 = vpack.c.bf16 %v128, %v127
    %v130 = vld [vmem:[#allocation5] sm:$0xf]
    %v131 = vld [vmem:[#allocation5 + $0x4] sm:$0xf]
    %v132 = vld [vmem:[#allocation5 + $0x8] sm:$0xf]
    %v133 = vld [vmem:[#allocation5 + $0xc] sm:$0xf]
    %v134 = vld [vmem:[#allocation5 + $0x10] sm:$0xf]
    %v135 = vld [vmem:[#allocation5 + $0x14] sm:$0xf]
    %v136 = vld [vmem:[#allocation5 + $0x18] sm:$0xf]
    %v137 = vld [vmem:[#allocation5 + $0x1c] sm:$0xf]
    %v138 = vld [vmem:[#allocation5 + $0x20] sm:$0xf]
    %v139 = vld [vmem:[#allocation5 + $0x24] sm:$0xf]
    %v140 = vld [vmem:[#allocation5 + $0x28] sm:$0xf]
    %v141 = vld [vmem:[#allocation5 + $0x2c] sm:$0xf]
    %v142 = vld [vmem:[#allocation5 + $0x30] sm:$0xf]
    %v143 = vld [vmem:[#allocation5 + $0x34] sm:$0xf]
    %v144 = vld [vmem:[#allocation5 + $0x38] sm:$0xf]
    %v145 = vld [vmem:[#allocation5 + $0x3c] sm:$0xf]
    %v146 = vld [vmem:[%s2] sm:$0x1]
    %v148 = vperm.slane %v146, 0
    %v166 = vunpack.c.l.b16 %v130
    %v167 = vunpack.c.l.b16 %v131
    %v168 = vunpack.c.l.b16 %v132
    %v169 = vunpack.c.l.b16 %v133
    %v170 = vunpack.c.l.b16 %v134
    %v171 = vunpack.c.l.b16 %v135
    %v172 = vunpack.c.l.b16 %v136
    %v173 = vunpack.c.l.b16 %v137
    %v174 = vunpack.c.l.b16 %v138
    %v175 = vunpack.c.l.b16 %v139
    %v176 = vunpack.c.l.b16 %v140
    %v177 = vunpack.c.l.b16 %v141
    %v178 = vunpack.c.l.b16 %v142
    %v179 = vunpack.c.l.b16 %v143
    %v180 = vunpack.c.l.b16 %v144
    %v181 = vunpack.c.l.b16 %v145
    %v182 = vpack.c.b16 %v167, %v166
    %v183 = vpack.c.b16 %v169, %v168
    %v184 = vpack.c.b16 %v171, %v170
    %v185 = vpack.c.b16 %v173, %v172
    %v186 = vpack.c.b16 %v175, %v174
    %v187 = vpack.c.b16 %v177, %v176
    %v188 = vpack.c.b16 %v179, %v178
    %v189 = vpack.c.b16 %v181, %v180
    %198 = vmatpush.bf16.msra.mxu0 %v189
    %199 = vmatpush.bf16.msra.mxu0 %v188
    %200 = vmatpush.bf16.msra.mxu0 %v187
    %201 = vmatpush.bf16.msra.mxu0 %v186
    %202 = vmatpush.bf16.msra.mxu0 %v185
    %203 = vmatpush.bf16.msra.mxu0 %v184
    %204 = vmatpush.bf16.msra.mxu0 %v183
    %205 = vmatpush.bf16.msra.mxu0 %v182
    %206 = vmatmul.bf16.gmra.mxu0 %v129
    %v207 = vpop.f32.mrf.mxu0
    %v208 = vadd.f32 %v148, %v207
    %v209 = vpop.f32.mrf.mxu0
    %v210 = vadd.f32 %v148, %v209
    %211 = vdwg.mxu0
    %v212 = vmax.f32 %v208, 0.0
    %v213 = vmax.f32 %v210, 0.0
    %v214 = vpack.c.bf16 %v213, %v212
    %v215 = vld [vmem:[#allocation7] sm:$0xf]
    %v216 = vld [vmem:[#allocation7 + $0x4] sm:$0xf]
    %v217 = vld [vmem:[#allocation7 + $0x8] sm:$0xf]
    %v218 = vld [vmem:[#allocation7 + $0xc] sm:$0xf]
    %v219 = vld [vmem:[#allocation7 + $0x10] sm:$0xf]
    %v220 = vld [vmem:[#allocation7 + $0x14] sm:$0xf]
    %v221 = vld [vmem:[#allocation7 + $0x18] sm:$0xf]
    %v222 = vld [vmem:[#allocation7 + $0x1c] sm:$0xf]
    %v223 = vld [vmem:[#allocation7 + $0x20] sm:$0xf]
    %v224 = vld [vmem:[#allocation7 + $0x24] sm:$0xf]
    %v225 = vld [vmem:[#allocation7 + $0x28] sm:$0xf]
    %v226 = vld [vmem:[#allocation7 + $0x2c] sm:$0xf]
    %v227 = vld [vmem:[#allocation7 + $0x30] sm:$0xf]
    %v228 = vld [vmem:[#allocation7 + $0x34] sm:$0xf]
    %v229 = vld [vmem:[#allocation7 + $0x38] sm:$0xf]
    %v230 = vld [vmem:[#allocation7 + $0x3c] sm:$0xf]
    %v231 = vld [vmem:[#allocation8] sm:$0xf]
    %v232 = vld [vmem:[#allocation8 + $0x4] sm:$0xf]
    %v233 = vld [vmem:[#allocation8 + $0x8] sm:$0xf]
    %v234 = vld [vmem:[#allocation8 + $0xc] sm:$0xf]
    %v235 = vld [vmem:[#allocation8 + $0x10] sm:$0xf]
    %v236 = vld [vmem:[#allocation8 + $0x14] sm:$0xf]
    %v237 = vld [vmem:[#allocation8 + $0x18] sm:$0xf]
    %v238 = vld [vmem:[#allocation8 + $0x1c] sm:$0xf]
    %v239 = vld [vmem:[#allocation8 + $0x20] sm:$0xf]
    %v240 = vld [vmem:[#allocation8 + $0x24] sm:$0xf]
    %v241 = vld [vmem:[#allocation8 + $0x28] sm:$0xf]
    %v242 = vld [vmem:[#allocation8 + $0x2c] sm:$0xf]
    %v243 = vld [vmem:[#allocation8 + $0x30] sm:$0xf]
    %v244 = vld [vmem:[#allocation8 + $0x34] sm:$0xf]
    %v245 = vld [vmem:[#allocation8 + $0x38] sm:$0xf]
    %v246 = vld [vmem:[#allocation8 + $0x3c] sm:$0xf]
    %v247 = vld [vmem:[%s5] sm:$0x1]
    %v264 = vunpack.c.l.b16 %v231
    %v265 = vunpack.c.l.b16 %v232
    %v266 = vunpack.c.l.b16 %v233
    %v267 = vunpack.c.l.b16 %v234
    %v268 = vunpack.c.l.b16 %v235
    %v269 = vunpack.c.l.b16 %v236
    %v270 = vunpack.c.l.b16 %v237
    %v271 = vunpack.c.l.b16 %v238
    %v272 = vunpack.c.l.b16 %v239
    %v273 = vunpack.c.l.b16 %v240
    %v274 = vunpack.c.l.b16 %v241
    %v275 = vunpack.c.l.b16 %v242
    %v276 = vunpack.c.l.b16 %v243
    %v277 = vunpack.c.l.b16 %v244
    %v278 = vunpack.c.l.b16 %v245
    %v279 = vunpack.c.l.b16 %v246
    %v280 = vpack.c.b16 %v265, %v264
    %v281 = vpack.c.b16 %v267, %v266
    %v282 = vpack.c.b16 %v269, %v268
    %v283 = vpack.c.b16 %v271, %v270
    %v284 = vpack.c.b16 %v273, %v272
    %v285 = vpack.c.b16 %v275, %v274
    %v286 = vpack.c.b16 %v277, %v276
    %v287 = vpack.c.b16 %v279, %v278
    %296 = vmatpush.bf16.msra.mxu0 %v287
    %297 = vmatpush.bf16.msra.mxu0 %v286
    %298 = vmatpush.bf16.msra.mxu0 %v285
    %299 = vmatpush.bf16.msra.mxu0 %v284
    %300 = vmatpush.bf16.msra.mxu0 %v283
    %301 = vmatpush.bf16.msra.mxu0 %v282
    %302 = vmatpush.bf16.msra.mxu0 %v281
    %303 = vmatpush.bf16.msra.mxu0 %v280
    %304 = vmatmul.bf16.gmra.mxu0 %v129
    %v305 = vpop.f32.mrf.mxu0
    %v306 = vadd.f32 0.0, %v305
    %v307 = vpop.f32.mrf.mxu0
    %v308 = vadd.f32 0.0, %v307
    %309 = vdwg.mxu0
    %v326 = vunpack.c.l.b16 %v215
    %v327 = vunpack.c.l.b16 %v216
    %v328 = vunpack.c.l.b16 %v217
    %v329 = vunpack.c.l.b16 %v218
    %v330 = vunpack.c.l.b16 %v219
    %v331 = vunpack.c.l.b16 %v220
    %v332 = vunpack.c.l.b16 %v221
    %v333 = vunpack.c.l.b16 %v222
    %v334 = vunpack.c.l.b16 %v223
    %v335 = vunpack.c.l.b16 %v224
    %v336 = vunpack.c.l.b16 %v225
    %v337 = vunpack.c.l.b16 %v226
    %v338 = vunpack.c.l.b16 %v227
    %v339 = vunpack.c.l.b16 %v228
    %v340 = vunpack.c.l.b16 %v229
    %v341 = vunpack.c.l.b16 %v230
    %v342 = vpack.c.b16 %v327, %v326
    %v343 = vpack.c.b16 %v329, %v328
    %v344 = vpack.c.b16 %v331, %v330
    %v345 = vpack.c.b16 %v333, %v332
    %v346 = vpack.c.b16 %v335, %v334
    %v347 = vpack.c.b16 %v337, %v336
    %v348 = vpack.c.b16 %v339, %v338
    %v349 = vpack.c.b16 %v341, %v340
    %358 = vmatpush.bf16.msra.mxu0 %v349
    %359 = vmatpush.bf16.msra.mxu0 %v348
    %360 = vmatpush.bf16.msra.mxu0 %v347
    %361 = vmatpush.bf16.msra.mxu0 %v346
    %362 = vmatpush.bf16.msra.mxu0 %v345
    %363 = vmatpush.bf16.msra.mxu0 %v344
    %364 = vmatpush.bf16.msra.mxu0 %v343
    %365 = vmatpush.bf16.msra.mxu0 %v342
    %366 = vmatmul.bf16.gmra.mxu0 %v214
    %v367 = vpop.f32.mrf.mxu0
    %v368 = vadd.f32 %v306, %v367
    %v369 = vpop.f32.mrf.mxu0
    %v370 = vadd.f32 %v308, %v369
    %371 = vdwg.mxu0
    %v373 = vperm.slane %v247, 0
    %v375 = vadd.f32 %v368, %v373
    %v376 = vadd.f32 %v370, %v373
    %v377 = vmax.f32 %v375, 0.0
    %v378 = vmax.f32 %v376, 0.0
    %v379 = vpack.c.bf16 %v378, %v377
    %v380 = vld [vmem:[#allocation10] sm:$0xf]
    %v381 = vld [vmem:[#allocation10 + $0x4] sm:$0xf]
    %v382 = vld [vmem:[#allocation10 + $0x8] sm:$0xf]
    %v383 = vld [vmem:[#allocation10 + $0xc] sm:$0xf]
    %v384 = vld [vmem:[#allocation10 + $0x10] sm:$0xf]
    %v385 = vld [vmem:[#allocation10 + $0x14] sm:$0xf]
    %v386 = vld [vmem:[#allocation10 + $0x18] sm:$0xf]
    %v387 = vld [vmem:[#allocation10 + $0x1c] sm:$0xf]
    %v388 = vld [vmem:[#allocation10 + $0x20] sm:$0xf]
    %v389 = vld [vmem:[#allocation10 + $0x24] sm:$0xf]
    %v390 = vld [vmem:[#allocation10 + $0x28] sm:$0xf]
    %v391 = vld [vmem:[#allocation10 + $0x2c] sm:$0xf]
    %v392 = vld [vmem:[#allocation10 + $0x30] sm:$0xf]
    %v393 = vld [vmem:[#allocation10 + $0x34] sm:$0xf]
    %v394 = vld [vmem:[#allocation10 + $0x38] sm:$0xf]
    %v395 = vld [vmem:[#allocation10 + $0x3c] sm:$0xf]
    %v396 = vld [vmem:[#allocation11] sm:$0xf]
    %v397 = vld [vmem:[#allocation11 + $0x4] sm:$0xf]
    %v398 = vld [vmem:[#allocation11 + $0x8] sm:$0xf]
    %v399 = vld [vmem:[#allocation11 + $0xc] sm:$0xf]
    %v400 = vld [vmem:[#allocation11 + $0x10] sm:$0xf]
    %v401 = vld [vmem:[#allocation11 + $0x14] sm:$0xf]
    %v402 = vld [vmem:[#allocation11 + $0x18] sm:$0xf]
    %v403 = vld [vmem:[#allocation11 + $0x1c] sm:$0xf]
    %v404 = vld [vmem:[#allocation11 + $0x20] sm:$0xf]
    %v405 = vld [vmem:[#allocation11 + $0x24] sm:$0xf]
    %v406 = vld [vmem:[#allocation11 + $0x28] sm:$0xf]
    %v407 = vld [vmem:[#allocation11 + $0x2c] sm:$0xf]
    %v408 = vld [vmem:[#allocation11 + $0x30] sm:$0xf]
    %v409 = vld [vmem:[#allocation11 + $0x34] sm:$0xf]
    %v410 = vld [vmem:[#allocation11 + $0x38] sm:$0xf]
    %v411 = vld [vmem:[#allocation11 + $0x3c] sm:$0xf]
    %v412 = vld [vmem:[%s8] sm:$0x1]
    %v429 = vunpack.c.l.b16 %v396
    %v430 = vunpack.c.l.b16 %v397
    %v431 = vunpack.c.l.b16 %v398
    %v432 = vunpack.c.l.b16 %v399
    %v433 = vunpack.c.l.b16 %v400
    %v434 = vunpack.c.l.b16 %v401
    %v435 = vunpack.c.l.b16 %v402
    %v436 = vunpack.c.l.b16 %v403
    %v437 = vunpack.c.l.b16 %v404
    %v438 = vunpack.c.l.b16 %v405
    %v439 = vunpack.c.l.b16 %v406
    %v440 = vunpack.c.l.b16 %v407
    %v441 = vunpack.c.l.b16 %v408
    %v442 = vunpack.c.l.b16 %v409
    %v443 = vunpack.c.l.b16 %v410
    %v444 = vunpack.c.l.b16 %v411
    %v445 = vpack.c.b16 %v430, %v429
    %v446 = vpack.c.b16 %v432, %v431
    %v447 = vpack.c.b16 %v434, %v433
    %v448 = vpack.c.b16 %v436, %v435
    %v449 = vpack.c.b16 %v438, %v437
    %v450 = vpack.c.b16 %v440, %v439
    %v451 = vpack.c.b16 %v442, %v441
    %v452 = vpack.c.b16 %v444, %v443
    %461 = vmatpush.bf16.msra.mxu0 %v452
    %462 = vmatpush.bf16.msra.mxu0 %v451
    %463 = vmatpush.bf16.msra.mxu0 %v450
    %464 = vmatpush.bf16.msra.mxu0 %v449
    %465 = vmatpush.bf16.msra.mxu0 %v448
    %466 = vmatpush.bf16.msra.mxu0 %v447
    %467 = vmatpush.bf16.msra.mxu0 %v446
    %468 = vmatpush.bf16.msra.mxu0 %v445
    %469 = vmatmul.bf16.gmra.mxu0 %v129
    %v470 = vpop.f32.mrf.mxu0
    %v471 = vadd.f32 0.0, %v470
    %v472 = vpop.f32.mrf.mxu0
    %v473 = vadd.f32 0.0, %v472
    %474 = vdwg.mxu0
    %v491 = vunpack.c.l.b16 %v380
    %v492 = vunpack.c.l.b16 %v381
    %v493 = vunpack.c.l.b16 %v382
    %v494 = vunpack.c.l.b16 %v383
    %v495 = vunpack.c.l.b16 %v384
    %v496 = vunpack.c.l.b16 %v385
    %v497 = vunpack.c.l.b16 %v386
    %v498 = vunpack.c.l.b16 %v387
    %v499 = vunpack.c.l.b16 %v388
    %v500 = vunpack.c.l.b16 %v389
    %v501 = vunpack.c.l.b16 %v390
    %v502 = vunpack.c.l.b16 %v391
    %v503 = vunpack.c.l.b16 %v392
    %v504 = vunpack.c.l.b16 %v393
    %v505 = vunpack.c.l.b16 %v394
    %v506 = vunpack.c.l.b16 %v395
    %v507 = vpack.c.b16 %v492, %v491
    %v508 = vpack.c.b16 %v494, %v493
    %v509 = vpack.c.b16 %v496, %v495
    %v510 = vpack.c.b16 %v498, %v497
    %v511 = vpack.c.b16 %v500, %v499
    %v512 = vpack.c.b16 %v502, %v501
    %v513 = vpack.c.b16 %v504, %v503
    %v514 = vpack.c.b16 %v506, %v505
    %523 = vmatpush.bf16.msra.mxu0 %v514
    %524 = vmatpush.bf16.msra.mxu0 %v513
    %525 = vmatpush.bf16.msra.mxu0 %v512
    %526 = vmatpush.bf16.msra.mxu0 %v511
    %527 = vmatpush.bf16.msra.mxu0 %v510
    %528 = vmatpush.bf16.msra.mxu0 %v509
    %529 = vmatpush.bf16.msra.mxu0 %v508
    %530 = vmatpush.bf16.msra.mxu0 %v507
    %531 = vmatmul.bf16.gmra.mxu0 %v379
    %v532 = vpop.f32.mrf.mxu0
    %v533 = vadd.f32 %v471, %v532
    %v534 = vpop.f32.mrf.mxu0
    %v535 = vadd.f32 %v473, %v534
    %536 = vdwg.mxu0
    %v538 = vperm.slane %v412, 0
    %v540 = vadd.f32 %v533, %v538
    %v541 = vadd.f32 %v535, %v538
    %542 = vst [vmem:[#allocation13] sm:$0xff] %v540
    %543 = vst [vmem:[#allocation13 + $0x8] sm:$0xff] %v541
    // Predicated region
    $region62: #{tpu_custom_call.1} parent=1 // pred_check
      _
    $region63: #{tpu_custom_call.1} parent=1 // pred_check_branch
      %545 = sbr.rel (0) target = $region65
    $region64: #{tpu_custom_call.1} parent=1 // pred_region
      %547 = vsyncadd [#allocation4], 0
      %s548 = sshll.u32 [#allocation13], 4
      %s549 = int_to_ptr.vmem [resolvable:$true] %s548
      %s550 = sshll.u32 %s9, 4
      %s551 = int_to_ptr.hbm [resolvable:$true] %s550
      %556 = dma.vmem_to_hbm [thread:$0]  %s549, 256, %s551, [#allocation4], 128, 128, 8
    $region65: #{tpu_custom_call.1} parent=1 // pred_fallthru
      _
    // Predicated region
    $region66: #{tpu_custom_call.1} parent=1 // pred_check
      _
    $region67: #{tpu_custom_call.1} parent=1 // pred_check_branch
      %558 = sbr.rel (0) target = $region69
    $region68: #{tpu_custom_call.1} parent=1 // pred_region
      %560 = dma.done [#allocation4], 256
    $region69: #{tpu_custom_call.1} parent=1 // pred_fallthru
      _
    %561 = vsyncpa [#allocation3], 1
    %562 = vsyncpa [#allocation6], 1
    %563 = vsyncpa [#allocation9], 1
    %564 = vsyncpa [#allocation12], 1
    %565 = vsyncpa [#allocation4], 1

</llo_original>
